<compile_context>
chip_gen: v6e
topology: v6e:2x2x1
jax: 0.10.0
libtpu: 0.0.40
codegen_flags: <defaults>
</compile_context>

<pallas_src>
import math
from functools import partial

import jax
import jax.numpy as jnp
from jax import lax
from jax.experimental import pallas as pl
from jax.experimental.pallas import tpu as pltpu


# ----------------------------------------------------------------------------
# Per-generation scoped-VMEM limit (v5e/v6e: 128 MiB physical, v7x: 64 MiB).
# ----------------------------------------------------------------------------
try:
    _VMEM_LIMIT = int(max(
        32 * 1024 * 1024,
        min(pltpu.get_tpu_info().vmem_capacity_bytes - (16 << 20), 96 << 20)))
except Exception:  # pragma: no cover - conservative fallback
    _VMEM_LIMIT = 48 * 1024 * 1024


def _tile(dim, target, align):
    """Largest `align`-multiple divisor of `dim` that is <= target, else full dim."""
    if dim <= target:
        return dim
    t = (target // align) * align
    while t >= align:
        if dim % t == 0:
            return t
        t -= align
    return dim


# ----------------------------------------------------------------------------
# Kernel 1: tiled linear (x @ W + b) — used for c_attn and c_proj.
# grid = (M//tm, N//tn, K//tk); K axis last with a resident f32 accumulator.
# bf16 casts of the x / W tiles happen in-kernel (VPU slack), not in XLA.
# ----------------------------------------------------------------------------
def _linear_kernel(x_ref, w_ref, b_ref, o_ref, acc_ref):
    k = pl.program_id(2)

    @pl.when(k == 0)
    def _init():
        acc_ref[...] = jnp.zeros_like(acc_ref)

    acc_ref[...] += jnp.dot(x_ref[...].astype(jnp.bfloat16),
                            w_ref[...].astype(jnp.bfloat16),
                            preferred_element_type=jnp.float32)

    @pl.when(k == pl.num_programs(2) - 1)
    def _finalize():
        o_ref[...] = (acc_ref[...] + b_ref[...]).astype(o_ref.dtype)


def linear(x2d, w, b, out_dtype=jnp.float32):
    M, K = x2d.shape
    Kw, N = w.shape
    assert Kw == K
    tm = _tile(M, 512, 16)    # 16-aligned -> clean bf16 sublane packing
    tn = _tile(N, 512, 128)
    tk = _tile(K, 1024, 128)
    grid = (M // tm, N // tn, K // tk)
    return pl.pallas_call(
        _linear_kernel,
        out_shape=jax.ShapeDtypeStruct((M, N), out_dtype),
        grid=grid,
        in_specs=[
            pl.BlockSpec((tm, tk), lambda i, j, k: (i, k)),
            pl.BlockSpec((tk, tn), lambda i, j, k: (k, j)),
            pl.BlockSpec((1, tn), lambda i, j, k: (0, j)),
        ],
        out_specs=pl.BlockSpec((tm, tn), lambda i, j, k: (i, j)),
        scratch_shapes=[pltpu.VMEM((tm, tn), jnp.float32)],
        compiler_params=pltpu.CompilerParams(
            dimension_semantics=("parallel", "parallel", "arbitrary"),
            vmem_limit_bytes=_VMEM_LIMIT),
    )(x2d, w, b.reshape(1, N).astype(jnp.float32))


# ----------------------------------------------------------------------------
# Kernel 2: flash attention with the FIRE bias fused in-kernel, heads folded
# into the block.  grid = (B, T//tq, T//tkv); kv axis last ("arbitrary").
# Online-softmax state (m, l, acc) is (H, tq, ·) VMEM scratch.  FIRE MLP
# params sit in SMEM; the (tq, tkv) distance tile + W hidden tiles are shared
# by all heads and the causal mask is computed once per tile.
# ----------------------------------------------------------------------------
def _flash_fire_kernel(q_ref, k_ref, v_ref, w1_ref, b1_ref, w2_ref, b2_ref,
                       o_ref, m_ref, l_ref, acc_ref,
                       *, scale, c, thr, eps, tq, tkv, n_head, mlp_width):
    qi = pl.program_id(1)
    kj = pl.program_id(2)
    q_start = qi * tq
    k_start = kj * tkv

    @pl.when(kj == 0)
    def _init():
        m_ref[...] = jnp.full_like(m_ref, -jnp.inf)
        l_ref[...] = jnp.zeros_like(l_ref)
        acc_ref[...] = jnp.zeros_like(acc_ref)

    # Skip kv tiles that lie entirely above the causal diagonal.
    @pl.when(k_start <= q_start + (tq - 1))
    def _compute():
        # softmax scale folded into the small (H, tq, D) q tile
        q = (q_ref[...].astype(jnp.float32) * scale).astype(jnp.bfloat16)
        k = k_ref[...]                           # (H, tkv, D) bf16
        v = v_ref[...]                           # (H, tkv, D) bf16

        # scores on the MXU (bf16 in, f32 accumulate), batched over heads
        s = jnp.einsum('htd,hsd->hts', q, k,
                       preferred_element_type=jnp.float32)     # (H, tq, tkv)

        # ---- FIRE bias, computed once per (q, kv) tile and shared by heads
        row = (q_start + lax.broadcasted_iota(jnp.int32, (tq, tkv), 0)
               ).astype(jnp.float32)             # query position i
        col = (k_start + lax.broadcasted_iota(jnp.int32, (tq, tkv), 1)
               ).astype(jnp.float32)             # key position j
        rel = jnp.log(jnp.abs(c * (row - col)) + 1.0)          # one full-tile log
        # normalizer depends only on the query row -> (tq, 1) column
        rowc = (q_start + lax.broadcasted_iota(jnp.int32, (tq, 1), 0)
                ).astype(jnp.float32)
        inv_norm = 1.0 / (jnp.log(jnp.abs(c * jnp.maximum(rowc, thr)) + 1.0)
                          + eps)                                # (tq, 1)
        nd = rel * inv_norm                                     # (tq, tkv)

        # causal mask additive term, computed once (not per head)
        mask_add = jnp.where(col <= row, 0.0, -jnp.inf)         # (tq, tkv)

        # 2-layer FIRE MLP: hidden tiles shared by all heads; per-head
        # contraction over the small width uses SMEM scalars.
        bias = [mask_add + b2_ref[h] for h in range(n_head)]
        for w in range(mlp_width):
            hidden = jnp.maximum(nd * w1_ref[w] + b1_ref[w], 0.0)
            for h in range(n_head):
                bias[h] = bias[h] + hidden * w2_ref[w, h]
        s = s + jnp.stack(bias, axis=0)                         # (H, tq, tkv)

        # ---- online softmax update (f32 statistics)
        m_prev = m_ref[...]
        m_new = jnp.maximum(m_prev, jnp.max(s, axis=-1, keepdims=True))
        alpha = jnp.exp(m_prev - m_new)
        p = jnp.exp(s - m_new)
        l_ref[...] = alpha * l_ref[...] + jnp.sum(p, axis=-1, keepdims=True)
        acc_ref[...] = alpha * acc_ref[...] + jnp.einsum(
            'hts,hsd->htd', p.astype(v.dtype), v,
            preferred_element_type=jnp.float32)
        m_ref[...] = m_new

    @pl.when(kj == pl.num_programs(2) - 1)
    def _finalize():
        inv_l = pl.reciprocal(l_ref[...], approx=True)
        o_ref[...] = (acc_ref[...] * inv_l).astype(o_ref.dtype)


def attention(q, k, v, w1, b1, w2, b2, *, scale, c, thr, eps):
    B, H, T, D = q.shape
    W = w1.shape[0]
    tq = _tile(T, 128, 128)
    tkv = _tile(T, 128, 128)
    grid = (B, T // tq, T // tkv)

    smem_spec = pl.BlockSpec(memory_space=pltpu.MemorySpace.SMEM)
    q_spec = pl.BlockSpec((None, H, tq, D), lambda b, i, j: (b, 0, i, 0))
    # Clamp the kv block index to the causal diagonal: above-diagonal grid
    # steps reuse the resident block, so their K/V DMA is suppressed.
    kv_spec = pl.BlockSpec(
        (None, H, tkv, D),
        lambda b, i, j: (b, 0, jnp.minimum(j, ((i + 1) * tq - 1) // tkv), 0))

    kernel = partial(_flash_fire_kernel, scale=scale, c=c, thr=thr, eps=eps,
                     tq=tq, tkv=tkv, n_head=H, mlp_width=W)
    return pl.pallas_call(
        kernel,
        out_shape=jax.ShapeDtypeStruct((B, H, T, D), jnp.bfloat16),
        grid=grid,
        in_specs=[q_spec, kv_spec, kv_spec,
                  smem_spec, smem_spec, smem_spec, smem_spec],
        out_specs=pl.BlockSpec((None, H, tq, D),
                               lambda b, i, j: (b, 0, i, 0)),
        scratch_shapes=[
            pltpu.VMEM((H, tq, 1), jnp.float32),   # running max
            pltpu.VMEM((H, tq, 1), jnp.float32),   # running sum
            pltpu.VMEM((H, tq, D), jnp.float32),   # output accumulator
        ],
        compiler_params=pltpu.CompilerParams(
            dimension_semantics=("parallel", "parallel", "arbitrary"),
            vmem_limit_bytes=_VMEM_LIMIT),
    )(q, k, v, w1, b1, w2, b2)


# ----------------------------------------------------------------------------
# Full forward pass (glue: bf16 reshapes / transposes only).
# ----------------------------------------------------------------------------
def causal_self_attention(x, params):
    B, T, C = x.shape
    H = params["n_head"]
    D = C // H

    # qkv projection (tiled Pallas matmul, in-kernel bf16 cast, f32 accum)
    x2d = x.reshape(B * T, C)
    qkv = linear(x2d, params["w_attn"], params["b_attn"],
                 out_dtype=jnp.bfloat16)                      # (B*T, 3C) bf16
    qkv = qkv.reshape(B, T, 3 * C)
    q, k, v = jnp.split(qkv, 3, axis=-1)

    def to_heads(t):   # layout plumbing in bf16 (half the HBM bytes of f32)
        return t.reshape(B, T, H, D).transpose(0, 2, 1, 3)    # (B, H, T, D)

    q, k, v = to_heads(q), to_heads(k), to_heads(v)
    # TODO(synk): index the head axis directly over the untransposed
    # (B, T, H, D) layout in the attention BlockSpecs (and write the output
    # there) to drop these two HBM transpose passes.

    thr = abs(params["L_multiplier"] * params["init_L"])
    y = attention(
        q, k, v,
        params["w1"].reshape(-1).astype(jnp.float32),
        params["b1"].reshape(-1).astype(jnp.float32),
        params["w2"].astype(jnp.float32),
        params["b2"].reshape(-1).astype(jnp.float32),
        scale=1.0 / math.sqrt(D),
        c=params["c"], thr=thr, eps=params["eps"])            # (B, H, T, D) bf16

    # merge heads (bf16) and output projection (tiled Pallas matmul)
    y = y.transpose(0, 2, 1, 3).reshape(B * T, C)
    y = linear(y, params["w_proj"], params["b_proj"], out_dtype=jnp.float32)
    return y.reshape(B, T, C)


if __name__ == "__main__":
    key = jax.random.PRNGKey(0)
    B, T, C, H = 2, 8, 32, 4          # n_embed=32, n_head=4, head_dim=8
    mlp_width = 32                    # FIRE MLP hidden width

    ks = jax.random.split(key, 6)
    params = dict(
        n_head=H,
        # c_attn / c_proj (weights stored (in, out))
        w_attn=(jax.random.normal(ks[0], (C, 3 * C), jnp.float32) * 0.02),
        b_attn=jnp.zeros((3 * C,), jnp.float32),
        w_proj=(jax.random.normal(ks[1], (C, C), jnp.float32) * 0.02),
        b_proj=jnp.zeros((C,), jnp.float32),
        # FIRE MLP: Linear(1, mlp_width) -> ReLU -> Linear(mlp_width, H)
        w1=(jax.random.normal(ks[2], (1, mlp_width), jnp.float32) * 0.5),
        b1=jnp.zeros((mlp_width,), jnp.float32),
        w2=(jax.random.normal(ks[3], (mlp_width, H), jnp.float32) * 0.5),
        b2=jnp.zeros((H,), jnp.float32),
        # FIRE scalars (deterministic init values from the module)
        c=0.1, init_L=512.0, L_multiplier=1.0, eps=1e-6,
    )

    x = jax.random.normal(ks[4], (B, T, C), jnp.float32)
    y = causal_self_attention(x, params)
    jax.block_until_ready(y)
    assert y.shape == (B, T, C) and y.dtype == jnp.float32
    print("KERNEL_OK")
</pallas_src>

<mosaic_0001>
module attributes {stable_mosaic.version = 11 : i64} {
  func.func @_linear_kernel(%arg0: i32, %arg1: i32, %arg2: i32, %arg3: memref<16x32xf32, #tpu.memory_space<vmem>>, %arg4: memref<32x96xf32, #tpu.memory_space<vmem>>, %arg5: memref<1x96xf32, #tpu.memory_space<vmem>>, %arg6: memref<16x96xbf16, #tpu.memory_space<vmem>>, %arg7: memref<16x96xf32, #tpu.memory_space<vmem>>) attributes {dimension_semantics = [#tpu.dimension_semantics<parallel>, #tpu.dimension_semantics<parallel>, #tpu.dimension_semantics<arbitrary>], iteration_bounds = array<i64: 1, 1, 1>, scalar_prefetch = 0 : i64, scratch_operands = 1 : i64, tpu.core_type = #tpu.core_type<tc>, window_params = [{transform_indices = @transform_0, window_bounds = array<i64: 16, 32>}, {transform_indices = @transform_1, window_bounds = array<i64: 32, 96>}, {transform_indices = @transform_2, window_bounds = array<i64: 1, 96>}, {transform_indices = @transform_3, window_bounds = array<i64: 16, 96>}]} {
    %c0_i32 = arith.constant 0 : i32
    %0 = arith.cmpi eq, %arg2, %c0_i32 : i32
    %1 = arith.extui %0 : i1 to i32
    %c0_i32_0 = arith.constant 0 : i32
    %2 = arith.cmpi ne, %1, %c0_i32_0 : i32
    scf.if %2 {
      %cst_10 = arith.constant 0.000000e+00 : f32
      %14 = vector.broadcast %cst_10 : f32 to vector<16x96xf32>
      %c0_11 = arith.constant 0 : index
      %c0_12 = arith.constant 0 : index
      %15 = vector.load %arg7[%c0_11, %c0_12] : memref<16x96xf32, #tpu.memory_space<vmem>>, vector<16x96xf32>
      tpu.vector_store %arg7[%c0_11, %c0_12], %14 {strides = array<i32>} : memref<16x96xf32, #tpu.memory_space<vmem>>, vector<16x96xf32>,
    } else {
    }
    %c0 = arith.constant 0 : index
    %c0_1 = arith.constant 0 : index
    %3 = vector.load %arg7[%c0, %c0_1] : memref<16x96xf32, #tpu.memory_space<vmem>>, vector<16x96xf32>
    %c0_2 = arith.constant 0 : index
    %c0_3 = arith.constant 0 : index
    %4 = vector.load %arg3[%c0_2, %c0_3] : memref<16x32xf32, #tpu.memory_space<vmem>>, vector<16x32xf32>
    %5 = arith.truncf %4 : vector<16x32xf32> to vector<16x32xbf16>
    %c0_4 = arith.constant 0 : index
    %c0_5 = arith.constant 0 : index
    %6 = vector.load %arg4[%c0_4, %c0_5] : memref<32x96xf32, #tpu.memory_space<vmem>>, vector<32x96xf32>
    %7 = arith.truncf %6 : vector<32x96xf32> to vector<32x96xbf16>
    %cst = arith.constant dense<0.000000e+00> : vector<16x96xf32>
    %8 = tpu.matmul %5, %7, %cst {dimension_numbers = #tpu.dot_dimension_numbers<[1], [0], [0], [1], [0, 0, 1, 1], [], []>} : vector<16x32xbf16>, vector<32x96xbf16>, vector<16x96xf32> -> vector<16x96xf32>
    %9 = arith.addf %3, %8 : vector<16x96xf32>
    %c0_6 = arith.constant 0 : index
    %c0_7 = arith.constant 0 : index
    %10 = vector.load %arg7[%c0_6, %c0_7] : memref<16x96xf32, #tpu.memory_space<vmem>>, vector<16x96xf32>
    tpu.vector_store %arg7[%c0_6, %c0_7], %9 {strides = array<i32>} : memref<16x96xf32, #tpu.memory_space<vmem>>, vector<16x96xf32>,
    %c0_i32_8 = arith.constant 0 : i32
    %11 = arith.cmpi eq, %arg2, %c0_i32_8 : i32
    %12 = arith.extui %11 : i1 to i32
    %c0_i32_9 = arith.constant 0 : i32
    %13 = arith.cmpi ne, %12, %c0_i32_9 : i32
    scf.if %13 {
      %c0_10 = arith.constant 0 : index
      %c0_11 = arith.constant 0 : index
      %14 = vector.load %arg7[%c0_10, %c0_11] : memref<16x96xf32, #tpu.memory_space<vmem>>, vector<16x96xf32>
      %c0_12 = arith.constant 0 : index
      %c0_13 = arith.constant 0 : index
      %15 = vector.load %arg5[%c0_12, %c0_13] : memref<1x96xf32, #tpu.memory_space<vmem>>, vector<1x96xf32>
      %16 = vector.broadcast %15 : vector<1x96xf32> to vector<16x96xf32>
      %17 = arith.addf %14, %16 : vector<16x96xf32>
      %18 = arith.truncf %17 : vector<16x96xf32> to vector<16x96xbf16>
      %c0_14 = arith.constant 0 : index
      %c0_15 = arith.constant 0 : index
      %19 = vector.load %arg6[%c0_14, %c0_15] : memref<16x96xbf16, #tpu.memory_space<vmem>>, vector<16x96xbf16>
      tpu.vector_store %arg6[%c0_14, %c0_15], %18 {strides = array<i32>} : memref<16x96xbf16, #tpu.memory_space<vmem>>, vector<16x96xbf16>,
    } else {
    }
    return
  }
  func.func @transform_0(%arg0: i32, %arg1: i32, %arg2: i32) -> (i32, i32) {
    %c0_i32 = arith.constant 0 : i32
    return %arg0, %arg2 : i32, i32
  }
  func.func @transform_1(%arg0: i32, %arg1: i32, %arg2: i32) -> (i32, i32) {
    %c0_i32 = arith.constant 0 : i32
    return %arg2, %arg1 : i32, i32
  }
  func.func @transform_2(%arg0: i32, %arg1: i32, %arg2: i32) -> (i32, i32) {
    %c0_i32 = arith.constant 0 : i32
    %c0_i32_0 = arith.constant 0 : i32
    return %c0_i32, %arg1 : i32, i32
  }
  func.func @transform_3(%arg0: i32, %arg1: i32, %arg2: i32) -> (i32, i32) {
    %c0_i32 = arith.constant 0 : i32
    return %arg0, %arg1 : i32, i32
  }
}

</mosaic_0001>

<llo_original>
// kernel: tpu_custom_call.1
$region0: #{tpu_custom_call.1}
  #allocation0 [shape = 'u32[]', space=smem, size = 0x4, offset = 0x4, fixed_abs, tag = 'smem constant byte address 0x4 - core index']
  #allocation1 [shape = 'u32[144,128]{1,0:T(1,128)}', space=vmem, size = 0x12000, scoped, tag = 'internal scratch']
  #allocation2 [shape = 'f32[16,96]{1,0:T(8,128)}', space=vmem, size = 0x2000, scoped, tag = 'scratch operand']
  %s0 = inlined_call_operand.hbm [shape: f32[16,32], index: 0, kind: input, shape index: {}]
  %s1 = inlined_call_operand.hbm [shape: f32[32,96], index: 1, kind: input, shape index: {}]
  %s2 = inlined_call_operand.vmem [shape: f32[1,96], index: 2, kind: input, shape index: {}]
  %s3 = inlined_call_operand.hbm [shape: bf16[16,96], index: 3, kind: output, shape index: {}]
  %s4 = sld [smem:[#allocation0]]
  $region38: #{tpu_custom_call.1} parent=0
    _
  %s6 = ssub.s32 1, %s4
  %s7 = scalar_select 0, %s6, %s4
  $region1: #{tpu_custom_call.1} parent=0
    #allocation3 [shape = 'u8[8192]{0}', space=vmem, size = 0x2000, scoped, tag = 'input window, operand 0, single buffered']
    #allocation4 [shape = 's32[1]{0}', space=sflag, size = 0x4, scoped, tag = 'scoped memory for tpu_custom_call.1']
    #allocation5 [shape = 's32[1]{0}', space=sflag, size = 0x4, scoped, tag = 'scoped memory for tpu_custom_call.1']
    #allocation6 [shape = 'u8[16384]{0}', space=vmem, size = 0x4000, scoped, tag = 'input window, operand 1, single buffered']
    #allocation7 [shape = 's32[1]{0}', space=sflag, size = 0x4, scoped, tag = 'scoped memory for tpu_custom_call.1']
    #allocation8 [shape = 'u8[4096]{0}', space=vmem, size = 0x1000, scoped, tag = 'output window, operand 0, single buffered']
    %8 = vsyncpa [#allocation4], 0
    %9 = vsyncpa [#allocation7], 0
    %10 = vsyncpa [#allocation5], 0
    // Predicated region
    $region2: #{tpu_custom_call.1} parent=1 // pred_check
      _
    $region3: #{tpu_custom_call.1} parent=1 // pred_check_branch
      %12 = sbr.rel (0) target = $region5
    $region4: #{tpu_custom_call.1} parent=1 // pred_region
      %s14 = ssub.s32 256, 256
      %15 = vsyncadd [#allocation4], %s14
      %s16 = sshll.u32 [#allocation3], 4
      %s17 = int_to_ptr.vmem [resolvable:$true] %s16
      %22 = dma.hbm_to_vmem [thread:$0]  %s0, 256, %s17, [#allocation4], 128, 128, 8
    $region5: #{tpu_custom_call.1} parent=1 // pred_fallthru
      _
    // Predicated region
    $region6: #{tpu_custom_call.1} parent=1 // pred_check
      _
    $region7: #{tpu_custom_call.1} parent=1 // pred_check_branch
      %24 = sbr.rel (0) target = $region9
    $region8: #{tpu_custom_call.1} parent=1 // pred_region
      %s26 = ssub.s32 512, 512
      %27 = vsyncadd [#allocation7], %s26
      %s28 = sshll.u32 [#allocation6], 4
      %s29 = int_to_ptr.vmem [resolvable:$true] %s28
      %34 = dma.hbm_to_vmem [thread:$0]  %s1, 512, %s29, [#allocation7], 128, 128, 8
    $region9: #{tpu_custom_call.1} parent=1 // pred_fallthru
      _
    // Predicated region
    $region10: #{tpu_custom_call.1} parent=1 // pred_check
      _
    $region11: #{tpu_custom_call.1} parent=1 // pred_check_branch
      %36 = sbr.rel (0) target = $region13
    $region12: #{tpu_custom_call.1} parent=1 // pred_region
      _
    $region13: #{tpu_custom_call.1} parent=1 // pred_fallthru
      _
    // Predicated region
    $region14: #{tpu_custom_call.1} parent=1 // pred_check
      _
    $region15: #{tpu_custom_call.1} parent=1 // pred_check_branch
      %38 = sbr.rel (0) target = $region17
    $region16: #{tpu_custom_call.1} parent=1 // pred_region
      %39 = dma.done [#allocation4], 256
    $region17: #{tpu_custom_call.1} parent=1 // pred_fallthru
      _
    // Predicated region
    $region18: #{tpu_custom_call.1} parent=1 // pred_check
      _
    $region19: #{tpu_custom_call.1} parent=1 // pred_check_branch
      %41 = sbr.rel (0) target = $region21
    $region20: #{tpu_custom_call.1} parent=1 // pred_region
      %42 = dma.done [#allocation7], 512
    $region21: #{tpu_custom_call.1} parent=1 // pred_fallthru
      _
    %p44 = scmp.eq.s32.totalorder 0, 0
    // Predicated region
    $region22: #{tpu_custom_call.1} parent=1 // pred_check
      %p45 = pneg %p44
    $region23: #{tpu_custom_call.1} parent=1 // pred_check_branch
      %47 = sbr.rel (%p45) target = $region25
    $region24: #{tpu_custom_call.1} parent=1 // pred_region
      %vm48 = vcmask 785408
      %49 = vst.msk [vmem:[#allocation2] sm:$0xff] %vm48, 0.0
      %50 = vst.msk [vmem:[#allocation2 + $0x8] sm:$0xff] %vm48, 0.0
    $region25: #{tpu_custom_call.1} parent=1 // pred_fallthru
      _
    %v51 = vld [vmem:[#allocation2] sm:$0xff]
    %v52 = vld [vmem:[#allocation2 + $0x8] sm:$0xff]
    %v53 = vld [vmem:[#allocation3] sm:$0xff]
    %v54 = vld [vmem:[#allocation3 + $0x8] sm:$0xff]
    %v55 = vpack.c.bf16 %v54, %v53
    %v56 = vld [vmem:[#allocation6] sm:$0xff]
    %v57 = vld [vmem:[#allocation6 + $0x8] sm:$0xff]
    %v58 = vld [vmem:[#allocation6 + $0x10] sm:$0xff]
    %v59 = vld [vmem:[#allocation6 + $0x18] sm:$0xff]
    %v60 = vpack.c.bf16 %v57, %v56
    %v61 = vpack.c.bf16 %v59, %v58
    %vm62 = vcmask 261120
    %v64 = vsel %vm62, %v55, 0
    %66 = vmatprep.subr.bf16.mxu0 0
    %67 = vmatpush1.bf16.msra.mxu0 0
    %68 = vmatprep.subr.bf16.mxu0 0
    %69 = vmatpush1.bf16.msra.mxu0 0
    %70 = vmatprep.subr.bf16.mxu0 0
    %71 = vmatpush1.bf16.msra.mxu0 0
    %72 = vmatprep.subr.bf16.mxu0 0
    %73 = vmatpush1.bf16.msra.mxu0 0
    %74 = vmatprep.subr.bf16.mxu0 0
    %75 = vmatpush1.bf16.msra.mxu0 0
    %76 = vmatprep.subr.bf16.mxu0 0
    %77 = vmatpush1.bf16.msra.mxu0 0
    %78 = vmatprep.subr.bf16.mxu0 0
    %79 = vmatpush1.bf16.msra.mxu0 %v61
    %80 = vmatprep.subr.bf16.mxu0 0
    %81 = vmatpush1.bf16.msra.mxu0 %v60
    %82 = vmatprep.subr.bf16.mxu0 0
    %83 = vmatpush2.bf16.msra.mxu0 0
    %84 = vmatprep.subr.bf16.mxu0 0
    %85 = vmatpush2.bf16.msra.mxu0 0
    %86 = vmatprep.subr.bf16.mxu0 0
    %87 = vmatpush2.bf16.msra.mxu0 0
    %88 = vmatprep.subr.bf16.mxu0 0
    %89 = vmatpush2.bf16.msra.mxu0 0
    %90 = vmatprep.subr.bf16.mxu0 0
    %91 = vmatpush2.bf16.msra.mxu0 0
    %92 = vmatprep.subr.bf16.mxu0 0
    %93 = vmatpush2.bf16.msra.mxu0 0
    %94 = vmatprep.subr.bf16.mxu0 0
    %95 = vmatpush2.bf16.msra.mxu0 0
    %96 = vmatprep.subr.bf16.mxu0 0
    %97 = vmatpush2.bf16.msra.mxu0 0
    %98 = vmatprep.mubr.bf16.mxu0 0
    %99 = vmatmul.mubr.bf16.gmra.mxu0 %v64
    %v100 = vpop.f32.mrf.mxu0
    %v101 = vadd.f32 0.0, %v100
    %v102 = vpop.f32.mrf.mxu0
    %v103 = vpop.f32.mrf.mxu0
    %v104 = vadd.f32 0.0, %v103
    %v105 = vpop.f32.mrf.mxu0
    %106 = vdwg.mxu0
    %v107 = vadd.f32 %v51, %v101
    %v108 = vadd.f32 %v52, %v104
    %vm109 = vcmask 785408
    %110 = vst.msk [vmem:[#allocation2] sm:$0xff] %vm109, %v107
    %111 = vst.msk [vmem:[#allocation2 + $0x8] sm:$0xff] %vm109, %v108
    // Predicated region
    $region26: #{tpu_custom_call.1} parent=1 // pred_check
      %p112 = pneg %p44
    $region27: #{tpu_custom_call.1} parent=1 // pred_check_branch
      %114 = sbr.rel (%p112) target = $region29
    $region28: #{tpu_custom_call.1} parent=1 // pred_region
      %v115 = vld [vmem:[#allocation2] sm:$0xff]
      %v116 = vld [vmem:[#allocation2 + $0x8] sm:$0xff]
      %v117 = vld [vmem:[%s2] sm:$0x1]
      %v119 = vlaneseq
      %v120 = vshrl.u32 %v119, 7
      %v121 = vsub.s32 0, %v120
      %v122 = vrot.slane %v117, %v121
      %v124 = vadd.f32 %v115, %v122
      %v125 = vadd.f32 %v116, %v122
      %v126 = vpack.c.bf16 %v125, %v124
      %v128 = vunpack.c.l.b16 %v126
      %v129 = vunpack.c.h.b16 %v126
      %v130 = vpack.c.b16 %v128, %v128
      %v131 = vpack.c.b16 %v129, %v129
      %vm134 = vcmask 781312
      %135 = vst.msk [vmem:[#allocation8] sm:$0xf] %vm134, %v130
      %136 = vst.msk [vmem:[#allocation8 + $0x4] sm:$0xf] %vm134, %v131
    $region29: #{tpu_custom_call.1} parent=1 // pred_fallthru
      _
    // Predicated region
    $region30: #{tpu_custom_call.1} parent=1 // pred_check
      _
    $region31: #{tpu_custom_call.1} parent=1 // pred_check_branch
      %138 = sbr.rel (0) target = $region33
    $region32: #{tpu_custom_call.1} parent=1 // pred_region
      %s140 = ssub.s32 128, 128
      %141 = vsyncadd [#allocation5], %s140
      %s142 = sshll.u32 [#allocation8], 4
      %s143 = int_to_ptr.vmem [resolvable:$true] %s142
      %148 = dma.vmem_to_hbm [thread:$0]  %s143, 128, %s3, [#allocation5], 64, 64, 4
    $region33: #{tpu_custom_call.1} parent=1 // pred_fallthru
      _
    // Predicated region
    $region34: #{tpu_custom_call.1} parent=1 // pred_check
      _
    $region35: #{tpu_custom_call.1} parent=1 // pred_check_branch
      %150 = sbr.rel (0) target = $region37
    $region36: #{tpu_custom_call.1} parent=1 // pred_region
      %151 = dma.done [#allocation5], 128
    $region37: #{tpu_custom_call.1} parent=1 // pred_fallthru
      _
    %152 = vsyncpa [#allocation4], 1
    %153 = vsyncpa [#allocation7], 1
    %154 = vsyncpa [#allocation5], 1

</llo_original>
